<compile_context>
chip_gen: v6e
topology: v6e:2x2x1
jax: 0.10.0
libtpu: 0.0.40
codegen_flags: <defaults>
</compile_context>

<pallas_src>
import math

import jax
import jax.numpy as jnp
from jax.experimental import pallas as pl
from jax.experimental.pallas import tpu as pltpu


def _round_up(v, m):
    return ((v + m - 1) // m) * m


def _vmem_budget_bytes():
    """Generation-aware VMEM budget (~75% of physical VMEM)."""
    try:
        cap = int(pltpu.get_tpu_info().vmem_capacity_bytes)
        return (cap * 3) // 4
    except Exception:
        return 48 * 1024 * 1024  # conservative fallback; fits v7x's 64 MiB


def _tensorcores_per_chip():
    """2 TensorCores on v7x and megacore parts (v4/v5p); 1 on v5e/v6e."""
    try:
        kind = jax.devices()[0].device_kind.lower()
        if "v7" in kind or "v4" in kind or "v5p" in kind:
            return 2
    except Exception:
        pass
    return 1


def _make_random_layer_kernel(dims, scale, n):
    """Kernel over refs: x_cat, R_0..R_{n-1}, out."""
    offs = []
    off = 0
    for d in dims:
        offs.append(off)
        off += d

    def kernel(xcat_ref, *rest):
        rs = rest[:n]
        out_ref = rest[n]
        xcat = xcat_ref[...]  # (tm, sum(D_i)) -- one lane-dense load per step

        def proj(i):
            a = xcat[:, offs[i]:offs[i] + dims[i]]  # static slice, no DMA
            # MXU matmul, f32 accumulation regardless of operand dtype.
            return jnp.dot(a, rs[i][...], preferred_element_type=jnp.float32)

        # torch: proj_0 / output_dim**(1/n), then elementwise products.
        acc = proj(0) * scale
        for i in range(1, n):
            acc = acc * proj(i)
        out_ref[...] = acc.astype(out_ref.dtype)

    return kernel


def random_layer_forward(input_list, random_matrices, *, tm=None,
                         compute_dtype=None, out_dtype=None):
    """Pallas implementation of RandomLayer.forward.

    input_list:       list of [B, D_i] float32 arrays
    random_matrices:  list of [D_i, O] float32 arrays
    compute_dtype:    None (f32, torch-exact) or jnp.bfloat16.  bf16 is an
                      opt-in HBM-byte reduction (operands cast in the wrapper,
                      f32 accumulation) -- NOT about MXU throughput at these K.
    out_dtype:        output dtype (default f32).
    returns:          [B, O] array
    """
    n = len(input_list)
    assert n == len(random_matrices) and n >= 1

    B = int(input_list[0].shape[0])
    O = int(random_matrices[0].shape[1])
    dims = [int(x.shape[1]) for x in input_list]
    for x, r in zip(input_list, random_matrices):
        assert x.shape[0] == B and r.shape == (x.shape[1], O)

    scale = 1.0 / math.pow(float(O), 1.0 / n)
    d_sum = sum(dims)
    out_dtype = jnp.float32 if out_dtype is None else out_dtype

    # ---- wrapper-side dtype handling (bf16 = DMA-byte reduction) ----------
    x_cat = jnp.concatenate(input_list, axis=1) if n > 1 else input_list[0]
    rs = list(random_matrices)
    if compute_dtype is not None:
        x_cat = x_cat.astype(compute_dtype)
        rs = [r.astype(compute_dtype) for r in rs]
    x_item = jnp.dtype(x_cat.dtype).itemsize
    r_item = jnp.dtype(rs[0].dtype).itemsize
    out_item = jnp.dtype(out_dtype).itemsize

    # ---- batch tile selection (multiple of 8, minimal padding) ------------
    budget = _vmem_budget_bytes()
    resident = d_sum * O * r_item                      # R_i, Buffered(1)
    per_row = 2 * d_sum * x_item + 2 * O * out_item    # double-buffered x/out
    B8 = _round_up(B, 8)
    tm_cap = 512
    min_tiles = _tensorcores_per_chip() if B >= 256 else 1
    if tm is None:
        n_tiles = max(min_tiles, pl.cdiv(B8, tm_cap))
        tm = min(_round_up(pl.cdiv(B, n_tiles), 8), B8)
    else:
        tm = min(_round_up(max(int(tm), 8), 8), B8)
    # Enforce the VMEM budget even for a user-supplied tm.
    while tm > 8 and resident + tm * per_row > budget:
        tm = max(8, _round_up(tm // 2, 8))

    n_tiles = pl.cdiv(B, tm)
    Bp = n_tiles * tm
    if Bp != B:
        x_cat = jnp.pad(x_cat, ((0, Bp - B), (0, 0)))

    kernel = _make_random_layer_kernel(dims, scale, n)

    flops = 2 * Bp * d_sum * O + n * Bp * O
    bytes_accessed = (Bp * d_sum * x_item
                      + d_sum * O * r_item
                      + Bp * O * out_item)
    cost = pl.CostEstimate(flops=flops, transcendentals=0,
                           bytes_accessed=bytes_accessed)

    footprint = resident + tm * per_row
    vmem_limit = int(min(max(2 * footprint, 16 * 1024 * 1024), budget))

    def build(r_pipeline_mode):
        in_specs = [pl.BlockSpec((tm, d_sum), lambda i: (i, 0))]
        for d in dims:
            if r_pipeline_mode is None:
                in_specs.append(pl.BlockSpec((d, O), lambda i: (0, 0)))
            else:
                in_specs.append(pl.BlockSpec((d, O), lambda i: (0, 0),
                                             pipeline_mode=r_pipeline_mode))
        return pl.pallas_call(
            kernel,
            out_shape=jax.ShapeDtypeStruct((Bp, O), out_dtype),
            grid_spec=pl.GridSpec(
                grid=(n_tiles,),
                in_specs=in_specs,
                out_specs=pl.BlockSpec((tm, O), lambda i: (i, 0)),
            ),
            compiler_params=pltpu.CompilerParams(
                dimension_semantics=("parallel",),
                vmem_limit_bytes=vmem_limit,
            ),
            cost_estimate=cost,
        )

    try:
        # Single-buffered, VMEM-resident R (fetched once, constant index_map).
        out = build(pl.Buffered(1))(x_cat, *rs)
    except Exception:
        # Fallback: default double-buffered specs (always supported).
        out = build(None)(x_cat, *rs)

    if Bp != B:
        out = out[:B]
    return out


def random_layer_reference(input_list, random_matrices):
    """Pure-JAX reference of the torch forward, for validation."""
    n = len(input_list)
    proj = [jnp.dot(x, r, precision=jax.lax.Precision.HIGHEST)
            for x, r in zip(input_list, random_matrices)]
    out = proj[0] / math.pow(float(random_matrices[0].shape[1]), 1.0 / n)
    for p in proj[1:]:
        out = out * p
    return out


if __name__ == "__main__":
    key = jax.random.PRNGKey(0)

    # Shapes consistent with the module's typical DTI usage: two inputs
    # (feature embedding and class-score vector) projected to output_dim.
    B = 8
    input_dim_list = [32, 16]
    output_dim = 256

    keys = jax.random.split(key, 2 * len(input_dim_list))
    # deterministic "randn" parameters (module __init__: torch.randn(D_i, output_dim))
    random_matrices = [
        jax.random.normal(keys[i], (d, output_dim), dtype=jnp.float32)
        for i, d in enumerate(input_dim_list)
    ]
    input_list = [
        jax.random.normal(keys[len(input_dim_list) + i], (B, d), dtype=jnp.float32)
        for i, d in enumerate(input_dim_list)
    ]

    ref = random_layer_reference(input_list, random_matrices)

    # 1) f32 path (torch-exact semantics), single batch tile.
    out = jax.block_until_ready(random_layer_forward(input_list, random_matrices))
    assert out.shape == (B, output_dim)
    assert jnp.allclose(out, ref, rtol=1e-3, atol=1e-3), "f32 mismatch vs reference"

    # 2) bf16 DMA-reduction path (wrapper-side casts, f32 accumulation).
    #    Opt-in fast path; not torch-exact, hence looser tolerance.
    out_bf16 = jax.block_until_ready(
        random_layer_forward(input_list, random_matrices,
                             compute_dtype=jnp.bfloat16))
    assert out_bf16.shape == (B, output_dim)
    assert jnp.allclose(out_bf16, ref, rtol=1e-1, atol=1e-1), "bf16 mismatch vs reference"

    # 3) multi-tile batch with minimal padding (B=300, tm=104 -> Bp=312, 3 tiles).
    B2 = 300
    keys2 = jax.random.split(jax.random.PRNGKey(1), len(input_dim_list))
    input_list2 = [
        jax.random.normal(keys2[i], (B2, d), dtype=jnp.float32)
        for i, d in enumerate(input_dim_list)
    ]
    out2 = jax.block_until_ready(
        random_layer_forward(input_list2, random_matrices, tm=104))
    ref2 = random_layer_reference(input_list2, random_matrices)
    assert out2.shape == (B2, output_dim)
    assert jnp.allclose(out2, ref2, rtol=1e-3, atol=1e-3), "padded-batch mismatch"

    print("KERNEL_OK")
</pallas_src>

<mosaic_0001>
module attributes {stable_mosaic.version = 11 : i64} {
  func.func @kernel(%arg0: i32, %arg1: memref<8x48xf32, #tpu.memory_space<vmem>>, %arg2: memref<32x256xf32, #tpu.memory_space<vmem>>, %arg3: memref<16x256xf32, #tpu.memory_space<vmem>>, %arg4: memref<8x256xf32, #tpu.memory_space<vmem>>) attributes {dimension_semantics = [#tpu.dimension_semantics<parallel>], iteration_bounds = array<i64: 1>, scalar_prefetch = 0 : i64, scratch_operands = 0 : i64, tpu.core_type = #tpu.core_type<tc>, window_params = [{transform_indices = @transform_0, window_bounds = array<i64: 8, 48>}, {pipeline_mode = #tpu.pipeline_mode<synchronous>, transform_indices = @transform_1, window_bounds = array<i64: 32, 256>}, {pipeline_mode = #tpu.pipeline_mode<synchronous>, transform_indices = @transform_2, window_bounds = array<i64: 16, 256>}, {transform_indices = @transform_3, window_bounds = array<i64: 8, 256>}]} {
    %c0 = arith.constant 0 : index
    %c0_0 = arith.constant 0 : index
    %0 = vector.load %arg1[%c0, %c0_0] : memref<8x48xf32, #tpu.memory_space<vmem>>, vector<8x48xf32>
    %1 = vector.extract_strided_slice %0 {offsets = [0, 0], sizes = [8, 32], strides = [1, 1]} : vector<8x48xf32> to vector<8x32xf32>
    %c0_1 = arith.constant 0 : index
    %c0_2 = arith.constant 0 : index
    %2 = vector.load %arg2[%c0_1, %c0_2] : memref<32x256xf32, #tpu.memory_space<vmem>>, vector<32x256xf32>
    %cst = arith.constant dense<0.000000e+00> : vector<8x256xf32>
    %3 = tpu.matmul %1, %2, %cst {dimension_numbers = #tpu.dot_dimension_numbers<[1], [0], [0], [1], [0, 0, 1, 1], [], []>} : vector<8x32xf32>, vector<32x256xf32>, vector<8x256xf32> -> vector<8x256xf32>
    %cst_3 = arith.constant 6.250000e-02 : f32
    %4 = vector.broadcast %cst_3 : f32 to vector<8x256xf32>
    %5 = arith.mulf %3, %4 : vector<8x256xf32>
    %6 = vector.extract_strided_slice %0 {offsets = [0, 32], sizes = [8, 16], strides = [1, 1]} : vector<8x48xf32> to vector<8x16xf32>
    %c0_4 = arith.constant 0 : index
    %c0_5 = arith.constant 0 : index
    %7 = vector.load %arg3[%c0_4, %c0_5] : memref<16x256xf32, #tpu.memory_space<vmem>>, vector<16x256xf32>
    %cst_6 = arith.constant dense<0.000000e+00> : vector<8x256xf32>
    %8 = tpu.matmul %6, %7, %cst_6 {dimension_numbers = #tpu.dot_dimension_numbers<[1], [0], [0], [1], [0, 0, 1, 1], [], []>} : vector<8x16xf32>, vector<16x256xf32>, vector<8x256xf32> -> vector<8x256xf32>
    %9 = arith.mulf %5, %8 : vector<8x256xf32>
    %c0_7 = arith.constant 0 : index
    %c0_8 = arith.constant 0 : index
    %10 = vector.load %arg4[%c0_7, %c0_8] : memref<8x256xf32, #tpu.memory_space<vmem>>, vector<8x256xf32>
    tpu.vector_store %arg4[%c0_7, %c0_8], %9 {strides = array<i32>} : memref<8x256xf32, #tpu.memory_space<vmem>>, vector<8x256xf32>,
    return
  }
  func.func @transform_0(%arg0: i32) -> (i32, i32) {
    %c0_i32 = arith.constant 0 : i32
    %c0_i32_0 = arith.constant 0 : i32
    return %arg0, %c0_i32 : i32, i32
  }
  func.func @transform_1(%arg0: i32) -> (i32, i32) {
    %c0_i32 = arith.constant 0 : i32
    %c0_i32_0 = arith.constant 0 : i32
    %c0_i32_1 = arith.constant 0 : i32
    return %c0_i32, %c0_i32_0 : i32, i32
  }
  func.func @transform_2(%arg0: i32) -> (i32, i32) {
    %c0_i32 = arith.constant 0 : i32
    %c0_i32_0 = arith.constant 0 : i32
    %c0_i32_1 = arith.constant 0 : i32
    return %c0_i32, %c0_i32_0 : i32, i32
  }
  func.func @transform_3(%arg0: i32) -> (i32, i32) {
    %c0_i32 = arith.constant 0 : i32
    %c0_i32_0 = arith.constant 0 : i32
    return %arg0, %c0_i32 : i32, i32
  }
}

module attributes {stable_mosaic.version = 11 : i64} {
  func.func @kernel(%arg0: i32, %arg1: memref<8x48xf32, #tpu.memory_space<vmem>>, %arg2: memref<32x256xf32, #tpu.memory_space<vmem>>, %arg3: memref<16x256xf32, #tpu.memory_space<vmem>>, %arg4: memref<8x256xf32, #tpu.memory_space<vmem>>) attributes {dimension_semantics = [#tpu.dimension_semantics<parallel>], iteration_bounds = array<i64: 1>, scalar_prefetch = 0 : i64, scratch_operands = 0 : i64, tpu.core_type = #tpu.core_type<tc>, window_params = [{transform_indices = @transform_0, window_bounds = array<i64: 8, 48>}, {pipeline_mode = #tpu.pipeline_mode<synchronous>, transform_indices = @transform_1, window_bounds = array<i64: 32, 256>}, {pipeline_mode = #tpu.pipeline_mode<synchronous>, transform_indices = @transform_2, window_bounds = array<i64: 16, 256>}, {transform_indices = @transform_3, window_bounds = array<i64: 8, 256>}]} {
    %c0 = arith.constant 0 : index
    %c0_0 = arith.constant 0 : index
    %0 = vector.load %arg1[%c0, %c0_0] : memref<8x48xf32, #tpu.memory_space<vmem>>, vector<8x48xf32>
    %1 = vector.extract_strided_slice %0 {offsets = [0, 0], sizes = [8, 32], strides = [1, 1]} : vector<8x48xf32> to vector<8x32xf32>
    %c0_1 = arith.constant 0 : index
    %c0_2 = arith.constant 0 : index
    %2 = vector.load %arg2[%c0_1, %c0_2] : memref<32x256xf32, #tpu.memory_space<vmem>>, vector<32x256xf32>
    %cst = arith.constant dense<0.000000e+00> : vector<8x256xf32>
    %3 = tpu.matmul %1, %2, %cst {dimension_numbers = #tpu.dot_dimension_numbers<[1], [0], [0], [1], [0, 0, 1, 1], [], []>} : vector<8x32xf32>, vector<32x256xf32>, vector<8x256xf32> -> vector<8x256xf32>
    %cst_3 = arith.constant 6.250000e-02 : f32
    %4 = vector.broadcast %cst_3 : f32 to vector<8x256xf32>
    %5 = arith.mulf %3, %4 : vector<8x256xf32>
    %6 = vector.extract_strided_slice %0 {offsets = [0, 32], sizes = [8, 16], strides = [1, 1]} : vector<8x48xf32> to vector<8x16xf32>
    %c0_4 = arith.constant 0 : index
    %c0_5 = arith.constant 0 : index
    %7 = vector.load %arg3[%c0_4, %c0_5] : memref<16x256xf32, #tpu.memory_space<vmem>>, vector<16x256xf32>
    %cst_6 = arith.constant dense<0.000000e+00> : vector<8x256xf32>
    %8 = tpu.matmul %6, %7, %cst_6 {dimension_numbers = #tpu.dot_dimension_numbers<[1], [0], [0], [1], [0, 0, 1, 1], [], []>} : vector<8x16xf32>, vector<16x256xf32>, vector<8x256xf32> -> vector<8x256xf32>
    %9 = arith.mulf %5, %8 : vector<8x256xf32>
    %c0_7 = arith.constant 0 : index
    %c0_8 = arith.constant 0 : index
    %10 = vector.load %arg4[%c0_7, %c0_8] : memref<8x256xf32, #tpu.memory_space<vmem>>, vector<8x256xf32>
    tpu.vector_store %arg4[%c0_7, %c0_8], %9 {strides = array<i32>} : memref<8x256xf32, #tpu.memory_space<vmem>>, vector<8x256xf32>,
    return
  }
  func.func @transform_0(%arg0: i32) -> (i32, i32) {
    %c0_i32 = arith.constant 0 : i32
    %c0_i32_0 = arith.constant 0 : i32
    return %arg0, %c0_i32 : i32, i32
  }
  func.func @transform_1(%arg0: i32) -> (i32, i32) {
    %c0_i32 = arith.constant 0 : i32
    %c0_i32_0 = arith.constant 0 : i32
    %c0_i32_1 = arith.constant 0 : i32
    return %c0_i32, %c0_i32_0 : i32, i32
  }
  func.func @transform_2(%arg0: i32) -> (i32, i32) {
    %c0_i32 = arith.constant 0 : i32
    %c0_i32_0 = arith.constant 0 : i32
    %c0_i32_1 = arith.constant 0 : i32
    return %c0_i32, %c0_i32_0 : i32, i32
  }
  func.func @transform_3(%arg0: i32) -> (i32, i32) {
    %c0_i32 = arith.constant 0 : i32
    %c0_i32_0 = arith.constant 0 : i32
    return %arg0, %c0_i32 : i32, i32
  }
}

</mosaic_0001>

<llo_original>
// kernel: tpu_custom_call.1
$region0: #{tpu_custom_call.1}
  #allocation0 [shape = 'u32[]', space=smem, size = 0x4, offset = 0x4, fixed_abs, tag = 'smem constant byte address 0x4 - core index']
  #allocation1 [shape = 'u32[144,128]{1,0:T(1,128)}', space=vmem, size = 0x12000, scoped, tag = 'internal scratch']
  %s0 = inlined_call_operand.hbm [shape: f32[8,48], index: 0, kind: input, shape index: {}]
  %s1 = inlined_call_operand.hbm [shape: f32[32,256], index: 1, kind: input, shape index: {}]
  %s2 = inlined_call_operand.hbm [shape: f32[16,256], index: 2, kind: input, shape index: {}]
  %s3 = inlined_call_operand.hbm [shape: f32[8,256], index: 3, kind: output, shape index: {}]
  %s4 = sld [smem:[#allocation0]]
  $region34: #{tpu_custom_call.1} parent=0
    _
  %s6 = ssub.s32 1, %s4
  %s7 = scalar_select 0, %s6, %s4
  $region1: #{tpu_custom_call.1} parent=0
    #allocation2 [shape = 'u8[4096]{0}', space=vmem, size = 0x1000, scoped, tag = 'input window, operand 0, single buffered']
    #allocation3 [shape = 's32[1]{0}', space=sflag, size = 0x4, scoped, tag = 'scoped memory for tpu_custom_call.1']
    #allocation4 [shape = 's32[1]{0}', space=sflag, size = 0x4, scoped, tag = 'scoped memory for tpu_custom_call.1']
    #allocation5 [shape = 'u8[32768]{0}', space=vmem, size = 0x8000, scoped, tag = 'input window, operand 1, single buffered']
    #allocation6 [shape = 's32[1]{0}', space=sflag, size = 0x4, scoped, tag = 'scoped memory for tpu_custom_call.1']
    #allocation7 [shape = 'u8[16384]{0}', space=vmem, size = 0x4000, scoped, tag = 'input window, operand 2, single buffered']
    #allocation8 [shape = 'u8[8192]{0}', space=vmem, size = 0x2000, scoped, tag = 'output window, operand 0, single buffered']
    %8 = vsyncpa [#allocation3], 0
    %9 = vsyncpa [#allocation6], 0
    %10 = vsyncpa [#allocation4], 0
    // Predicated region
    $region2: #{tpu_custom_call.1} parent=1 // pred_check
      _
    $region3: #{tpu_custom_call.1} parent=1 // pred_check_branch
      %12 = sbr.rel (0) target = $region5
    $region4: #{tpu_custom_call.1} parent=1 // pred_region
      %s14 = ssub.s32 128, 128
      %15 = vsyncadd [#allocation3], %s14
      %s17 = sshll.u32 [#allocation2], 4
      %s18 = int_to_ptr.vmem [resolvable:$true] %s17
      %20 = dma.hbm_to_vmem [thread:$0]  %s0, 128, %s18, [#allocation3]
    $region5: #{tpu_custom_call.1} parent=1 // pred_fallthru
      _
    // Predicated region
    $region6: #{tpu_custom_call.1} parent=1 // pred_check
      _
    $region7: #{tpu_custom_call.1} parent=1 // pred_check_branch
      %22 = sbr.rel (0) target = $region9
    $region8: #{tpu_custom_call.1} parent=1 // pred_region
      %s24 = ssub.s32 1024, 1024
      %25 = vsyncadd [#allocation6], %s24
      %s26 = sshll.u32 [#allocation5], 4
      %s27 = int_to_ptr.vmem [resolvable:$true] %s26
      %32 = dma.hbm_to_vmem [thread:$0]  %s1, 1024, %s27, [#allocation6], 256, 256, 16
    $region9: #{tpu_custom_call.1} parent=1 // pred_fallthru
      _
    // Predicated region
    $region10: #{tpu_custom_call.1} parent=1 // pred_check
      _
    $region11: #{tpu_custom_call.1} parent=1 // pred_check_branch
      %34 = sbr.rel (0) target = $region13
    $region12: #{tpu_custom_call.1} parent=1 // pred_region
      %s36 = ssub.s32 512, 512
      %37 = vsyncadd [#allocation6], %s36
      %s38 = sshll.u32 [#allocation7], 4
      %s39 = int_to_ptr.vmem [resolvable:$true] %s38
      %44 = dma.hbm_to_vmem [thread:$0]  %s2, 512, %s39, [#allocation6], 256, 256, 16
    $region13: #{tpu_custom_call.1} parent=1 // pred_fallthru
      _
    // Predicated region
    $region14: #{tpu_custom_call.1} parent=1 // pred_check
      _
    $region15: #{tpu_custom_call.1} parent=1 // pred_check_branch
      %46 = sbr.rel (0) target = $region17
    $region16: #{tpu_custom_call.1} parent=1 // pred_region
      %47 = dma.done [#allocation3], 128
    $region17: #{tpu_custom_call.1} parent=1 // pred_fallthru
      _
    // Predicated region
    $region18: #{tpu_custom_call.1} parent=1 // pred_check
      _
    $region19: #{tpu_custom_call.1} parent=1 // pred_check_branch
      %49 = sbr.rel (0) target = $region21
    $region20: #{tpu_custom_call.1} parent=1 // pred_region
      %50 = dma.done [#allocation6], 1024
    $region21: #{tpu_custom_call.1} parent=1 // pred_fallthru
      _
    // Predicated region
    $region22: #{tpu_custom_call.1} parent=1 // pred_check
      _
    $region23: #{tpu_custom_call.1} parent=1 // pred_check_branch
      %52 = sbr.rel (0) target = $region25
    $region24: #{tpu_custom_call.1} parent=1 // pred_region
      %53 = dma.done [#allocation6], 512
    $region25: #{tpu_custom_call.1} parent=1 // pred_fallthru
      _
    %v54 = vld [vmem:[#allocation2] sm:$0xff]
    %v55 = vld [vmem:[#allocation5] sm:$0xff]
    %v56 = vld [vmem:[#allocation5 + $0x8] sm:$0xff]
    %v57 = vld [vmem:[#allocation5 + $0x10] sm:$0xff]
    %v58 = vld [vmem:[#allocation5 + $0x18] sm:$0xff]
    %v59 = vld [vmem:[#allocation5 + $0x20] sm:$0xff]
    %v60 = vld [vmem:[#allocation5 + $0x28] sm:$0xff]
    %v61 = vld [vmem:[#allocation5 + $0x30] sm:$0xff]
    %v62 = vld [vmem:[#allocation5 + $0x38] sm:$0xff]
    %vm63 = vcmask 261120
    %v65 = vsel %vm63, %v54, 0
    %67 = vmatprep.subr.mxu0 0.0
    %68 = vmatpush1.msra.mxu0 0.0
    %69 = vmatprep.subr.mxu0 0.0
    %70 = vmatpush1.msra.mxu0 0.0
    %71 = vmatprep.subr.mxu0 0.0
    %72 = vmatpush1.msra.mxu0 0.0
    %73 = vmatprep.subr.mxu0 0.0
    %74 = vmatpush1.msra.mxu0 0.0
    %75 = vmatprep.subr.mxu0 0.0
    %76 = vmatpush1.msra.mxu0 0.0
    %77 = vmatprep.subr.mxu0 0.0
    %78 = vmatpush1.msra.mxu0 0.0
    %79 = vmatprep.subr.mxu0 0.0
    %80 = vmatpush1.msra.mxu0 0.0
    %81 = vmatprep.subr.mxu0 0.0
    %82 = vmatpush1.msra.mxu0 0.0
    %83 = vmatprep.subr.mxu0 0.0
    %84 = vmatpush1.msra.mxu0 0.0
    %85 = vmatprep.subr.mxu0 0.0
    %86 = vmatpush1.msra.mxu0 0.0
    %87 = vmatprep.subr.mxu0 0.0
    %88 = vmatpush1.msra.mxu0 0.0
    %89 = vmatprep.subr.mxu0 0.0
    %90 = vmatpush1.msra.mxu0 0.0
    %91 = vmatprep.subr.mxu0 %v62
    %92 = vmatpush1.msra.mxu0 %v61
    %93 = vmatprep.subr.mxu0 %v60
    %94 = vmatpush1.msra.mxu0 %v59
    %95 = vmatprep.subr.mxu0 %v58
    %96 = vmatpush1.msra.mxu0 %v57
    %97 = vmatprep.subr.mxu0 %v56
    %98 = vmatpush1.msra.mxu0 %v55
    %99 = vmatprep.subr.mxu0 0.0
    %100 = vmatpush2.msra.mxu0 0.0
    %101 = vmatprep.subr.mxu0 0.0
    %102 = vmatpush2.msra.mxu0 0.0
    %103 = vmatprep.subr.mxu0 0.0
    %104 = vmatpush2.msra.mxu0 0.0
    %105 = vmatprep.subr.mxu0 0.0
    %106 = vmatpush2.msra.mxu0 0.0
    %107 = vmatprep.subr.mxu0 0.0
    %108 = vmatpush2.msra.mxu0 0.0
    %109 = vmatprep.subr.mxu0 0.0
    %110 = vmatpush2.msra.mxu0 0.0
    %111 = vmatprep.subr.mxu0 0.0
    %112 = vmatpush2.msra.mxu0 0.0
    %113 = vmatprep.subr.mxu0 0.0
    %114 = vmatpush2.msra.mxu0 0.0
    %115 = vmatprep.subr.mxu0 0.0
    %116 = vmatpush2.msra.mxu0 0.0
    %117 = vmatprep.subr.mxu0 0.0
    %118 = vmatpush2.msra.mxu0 0.0
    %119 = vmatprep.subr.mxu0 0.0
    %120 = vmatpush2.msra.mxu0 0.0
    %121 = vmatprep.subr.mxu0 0.0
    %122 = vmatpush2.msra.mxu0 0.0
    %123 = vmatprep.subr.mxu0 0.0
    %124 = vmatpush2.msra.mxu0 0.0
    %125 = vmatprep.subr.mxu0 0.0
    %126 = vmatpush2.msra.mxu0 0.0
    %127 = vmatprep.subr.mxu0 0.0
    %128 = vmatpush2.msra.mxu0 0.0
    %129 = vmatprep.subr.mxu0 0.0
    %130 = vmatpush2.msra.mxu0 0.0
    %131 = vmatprep.mubr.f32.mxu0 0.0
    %132 = vmatmul.mubr.f32.gmra.mxu0 %v65
    %v133 = vpop.f32.mrf.mxu0
    %v134 = vadd.f32 0.0, %v133
    %v135 = vpop.f32.mrf.mxu0
    %v136 = vadd.f32 0.0, %v135
    %137 = vdwg.mxu0
    %v138 = vmul.f32 %v134, 0.0625
    %v139 = vmul.f32 %v136, 0.0625
    %v140 = vld [vmem:[#allocation7] sm:$0xff]
    %v141 = vld [vmem:[#allocation7 + $0x8] sm:$0xff]
    %v142 = vld [vmem:[#allocation7 + $0x10] sm:$0xff]
    %v143 = vld [vmem:[#allocation7 + $0x18] sm:$0xff]
    %144 = vrot.lane.b32.xlu0 %v54, 96
    %v145 = vpop.permute.xlu0 %144
    %vm146 = vcmask 130048
    %v147 = vsel %vm146, %v145, 0
    %149 = vmatprep.subr.mxu0 0.0
    %150 = vmatpush1.msra.mxu0 0.0
    %151 = vmatprep.subr.mxu0 0.0
    %152 = vmatpush1.msra.mxu0 0.0
    %153 = vmatprep.subr.mxu0 0.0
    %154 = vmatpush1.msra.mxu0 0.0
    %155 = vmatprep.subr.mxu0 0.0
    %156 = vmatpush1.msra.mxu0 0.0
    %157 = vmatprep.subr.mxu0 0.0
    %158 = vmatpush1.msra.mxu0 0.0
    %159 = vmatprep.subr.mxu0 0.0
    %160 = vmatpush1.msra.mxu0 0.0
    %161 = vmatprep.subr.mxu0 0.0
    %162 = vmatpush1.msra.mxu0 0.0
    %163 = vmatprep.subr.mxu0 0.0
    %164 = vmatpush1.msra.mxu0 0.0
    %165 = vmatprep.subr.mxu0 0.0
    %166 = vmatpush1.msra.mxu0 0.0
    %167 = vmatprep.subr.mxu0 0.0
    %168 = vmatpush1.msra.mxu0 0.0
    %169 = vmatprep.subr.mxu0 0.0
    %170 = vmatpush1.msra.mxu0 0.0
    %171 = vmatprep.subr.mxu0 0.0
    %172 = vmatpush1.msra.mxu0 0.0
    %173 = vmatprep.subr.mxu0 0.0
    %174 = vmatpush1.msra.mxu0 0.0
    %175 = vmatprep.subr.mxu0 0.0
    %176 = vmatpush1.msra.mxu0 0.0
    %177 = vmatprep.subr.mxu0 %v143
    %178 = vmatpush1.msra.mxu0 %v142
    %179 = vmatprep.subr.mxu0 %v141
    %180 = vmatpush1.msra.mxu0 %v140
    %181 = vmatprep.subr.mxu0 0.0
    %182 = vmatpush2.msra.mxu0 0.0
    %183 = vmatprep.subr.mxu0 0.0
    %184 = vmatpush2.msra.mxu0 0.0
    %185 = vmatprep.subr.mxu0 0.0
    %186 = vmatpush2.msra.mxu0 0.0
    %187 = vmatprep.subr.mxu0 0.0
    %188 = vmatpush2.msra.mxu0 0.0
    %189 = vmatprep.subr.mxu0 0.0
    %190 = vmatpush2.msra.mxu0 0.0
    %191 = vmatprep.subr.mxu0 0.0
    %192 = vmatpush2.msra.mxu0 0.0
    %193 = vmatprep.subr.mxu0 0.0
    %194 = vmatpush2.msra.mxu0 0.0
    %195 = vmatprep.subr.mxu0 0.0
    %196 = vmatpush2.msra.mxu0 0.0
    %197 = vmatprep.subr.mxu0 0.0
    %198 = vmatpush2.msra.mxu0 0.0
    %199 = vmatprep.subr.mxu0 0.0
    %200 = vmatpush2.msra.mxu0 0.0
    %201 = vmatprep.subr.mxu0 0.0
    %202 = vmatpush2.msra.mxu0 0.0
    %203 = vmatprep.subr.mxu0 0.0
    %204 = vmatpush2.msra.mxu0 0.0
    %205 = vmatprep.subr.mxu0 0.0
    %206 = vmatpush2.msra.mxu0 0.0
    %207 = vmatprep.subr.mxu0 0.0
    %208 = vmatpush2.msra.mxu0 0.0
    %209 = vmatprep.subr.mxu0 0.0
    %210 = vmatpush2.msra.mxu0 0.0
    %211 = vmatprep.subr.mxu0 0.0
    %212 = vmatpush2.msra.mxu0 0.0
    %213 = vmatprep.mubr.f32.mxu0 0.0
    %214 = vmatmul.mubr.f32.gmra.mxu0 %v147
    %v215 = vpop.f32.mrf.mxu0
    %v216 = vadd.f32 0.0, %v215
    %v217 = vpop.f32.mrf.mxu0
    %v218 = vadd.f32 0.0, %v217
    %219 = vdwg.mxu0
    %v220 = vmul.f32 %v138, %v216
    %v221 = vmul.f32 %v139, %v218
    %222 = vst [vmem:[#allocation8] sm:$0xff] %v220
    %223 = vst [vmem:[#allocation8 + $0x8] sm:$0xff] %v221
    // Predicated region
    $region26: #{tpu_custom_call.1} parent=1 // pred_check
      _
    $region27: #{tpu_custom_call.1} parent=1 // pred_check_branch
      %225 = sbr.rel (0) target = $region29
    $region28: #{tpu_custom_call.1} parent=1 // pred_region
      %s227 = ssub.s32 256, 256
      %228 = vsyncadd [#allocation4], %s227
      %s230 = sshll.u32 [#allocation8], 4
      %s231 = int_to_ptr.vmem [resolvable:$true] %s230
      %233 = dma.vmem_to_hbm [thread:$0]  %s231, 256, %s3, [#allocation4]
    $region29: #{tpu_custom_call.1} parent=1 // pred_fallthru
      _
    // Predicated region
    $region30: #{tpu_custom_call.1} parent=1 // pred_check
      _
    $region31: #{tpu_custom_call.1} parent=1 // pred_check_branch
      %235 = sbr.rel (0) target = $region33
    $region32: #{tpu_custom_call.1} parent=1 // pred_region
      %236 = dma.done [#allocation4], 256
    $region33: #{tpu_custom_call.1} parent=1 // pred_fallthru
      _
    %237 = vsyncpa [#allocation3], 1
    %238 = vsyncpa [#allocation6], 1
    %239 = vsyncpa [#allocation4], 1

// kernel: tpu_custom_call.1
$region0: #{tpu_custom_call.1}
  #allocation0 [shape = 'u32[]', space=smem, size = 0x4, offset = 0x4, fixed_abs, tag = 'smem constant byte address 0x4 - core index']
  #allocation1 [shape = 'u32[144,128]{1,0:T(1,128)}', space=vmem, size = 0x12000, scoped, tag = 'internal scratch']
  %s0 = inlined_call_operand.hbm [shape: f32[8,48], index: 0, kind: input, shape index: {}]
  %s1 = inlined_call_operand.hbm [shape: f32[32,256], index: 1, kind: input, shape index: {}]
  %s2 = inlined_call_operand.hbm [shape: f32[16,256], index: 2, kind: input, shape index: {}]
  %s3 = inlined_call_operand.hbm [shape: f32[8,256], index: 3, kind: output, shape index: {}]
  %s4 = sld [smem:[#allocation0]]
  $region34: #{tpu_custom_call.1} parent=0
    _
  %s6 = ssub.s32 1, %s4
  %s7 = scalar_select 0, %s6, %s4
  $region1: #{tpu_custom_call.1} parent=0
    #allocation2 [shape = 'u8[4096]{0}', space=vmem, size = 0x1000, scoped, tag = 'input window, operand 0, single buffered']
    #allocation3 [shape = 's32[1]{0}', space=sflag, size = 0x4, scoped, tag = 'scoped memory for tpu_custom_call.1']
    #allocation4 [shape = 's32[1]{0}', space=sflag, size = 0x4, scoped, tag = 'scoped memory for tpu_custom_call.1']
    #allocation5 [shape = 'u8[32768]{0}', space=vmem, size = 0x8000, scoped, tag = 'input window, operand 1, single buffered']
    #allocation6 [shape = 's32[1]{0}', space=sflag, size = 0x4, scoped, tag = 'scoped memory for tpu_custom_call.1']
    #allocation7 [shape = 'u8[16384]{0}', space=vmem, size = 0x4000, scoped, tag = 'input window, operand 2, single buffered']
    #allocation8 [shape = 'u8[8192]{0}', space=vmem, size = 0x2000, scoped, tag = 'output window, operand 0, single buffered']
    %8 = vsyncpa [#allocation3], 0
    %9 = vsyncpa [#allocation6], 0
    %10 = vsyncpa [#allocation4], 0
    // Predicated region
    $region2: #{tpu_custom_call.1} parent=1 // pred_check
      _
    $region3: #{tpu_custom_call.1} parent=1 // pred_check_branch
      %12 = sbr.rel (0) target = $region5
    $region4: #{tpu_custom_call.1} parent=1 // pred_region
      %s14 = ssub.s32 128, 128
      %15 = vsyncadd [#allocation3], %s14
      %s17 = sshll.u32 [#allocation2], 4
      %s18 = int_to_ptr.vmem [resolvable:$true] %s17
      %20 = dma.hbm_to_vmem [thread:$0]  %s0, 128, %s18, [#allocation3]
    $region5: #{tpu_custom_call.1} parent=1 // pred_fallthru
      _
    // Predicated region
    $region6: #{tpu_custom_call.1} parent=1 // pred_check
      _
    $region7: #{tpu_custom_call.1} parent=1 // pred_check_branch
      %22 = sbr.rel (0) target = $region9
    $region8: #{tpu_custom_call.1} parent=1 // pred_region
      %s24 = ssub.s32 1024, 1024
      %25 = vsyncadd [#allocation6], %s24
      %s26 = sshll.u32 [#allocation5], 4
      %s27 = int_to_ptr.vmem [resolvable:$true] %s26
      %32 = dma.hbm_to_vmem [thread:$0]  %s1, 1024, %s27, [#allocation6], 256, 256, 16
    $region9: #{tpu_custom_call.1} parent=1 // pred_fallthru
      _
    // Predicated region
    $region10: #{tpu_custom_call.1} parent=1 // pred_check
      _
    $region11: #{tpu_custom_call.1} parent=1 // pred_check_branch
      %34 = sbr.rel (0) target = $region13
    $region12: #{tpu_custom_call.1} parent=1 // pred_region
      %s36 = ssub.s32 512, 512
      %37 = vsyncadd [#allocation6], %s36
      %s38 = sshll.u32 [#allocation7], 4
      %s39 = int_to_ptr.vmem [resolvable:$true] %s38
      %44 = dma.hbm_to_vmem [thread:$0]  %s2, 512, %s39, [#allocation6], 256, 256, 16
    $region13: #{tpu_custom_call.1} parent=1 // pred_fallthru
      _
    // Predicated region
    $region14: #{tpu_custom_call.1} parent=1 // pred_check
      _
    $region15: #{tpu_custom_call.1} parent=1 // pred_check_branch
      %46 = sbr.rel (0) target = $region17
    $region16: #{tpu_custom_call.1} parent=1 // pred_region
      %47 = dma.done [#allocation3], 128
    $region17: #{tpu_custom_call.1} parent=1 // pred_fallthru
      _
    // Predicated region
    $region18: #{tpu_custom_call.1} parent=1 // pred_check
      _
    $region19: #{tpu_custom_call.1} parent=1 // pred_check_branch
      %49 = sbr.rel (0) target = $region21
    $region20: #{tpu_custom_call.1} parent=1 // pred_region
      %50 = dma.done [#allocation6], 1024
    $region21: #{tpu_custom_call.1} parent=1 // pred_fallthru
      _
    // Predicated region
    $region22: #{tpu_custom_call.1} parent=1 // pred_check
      _
    $region23: #{tpu_custom_call.1} parent=1 // pred_check_branch
      %52 = sbr.rel (0) target = $region25
    $region24: #{tpu_custom_call.1} parent=1 // pred_region
      %53 = dma.done [#allocation6], 512
    $region25: #{tpu_custom_call.1} parent=1 // pred_fallthru
      _
    %v54 = vld [vmem:[#allocation2] sm:$0xff]
    %v55 = vld [vmem:[#allocation5] sm:$0xff]
    %v56 = vld [vmem:[#allocation5 + $0x8] sm:$0xff]
    %v57 = vld [vmem:[#allocation5 + $0x10] sm:$0xff]
    %v58 = vld [vmem:[#allocation5 + $0x18] sm:$0xff]
    %v59 = vld [vmem:[#allocation5 + $0x20] sm:$0xff]
    %v60 = vld [vmem:[#allocation5 + $0x28] sm:$0xff]
    %v61 = vld [vmem:[#allocation5 + $0x30] sm:$0xff]
    %v62 = vld [vmem:[#allocation5 + $0x38] sm:$0xff]
    %vm63 = vcmask 261120
    %v65 = vsel %vm63, %v54, 0
    %67 = vmatprep.subr.mxu0 0.0
    %68 = vmatpush1.msra.mxu0 0.0
    %69 = vmatprep.subr.mxu0 0.0
    %70 = vmatpush1.msra.mxu0 0.0
    %71 = vmatprep.subr.mxu0 0.0
    %72 = vmatpush1.msra.mxu0 0.0
    %73 = vmatprep.subr.mxu0 0.0
    %74 = vmatpush1.msra.mxu0 0.0
    %75 = vmatprep.subr.mxu0 0.0
    %76 = vmatpush1.msra.mxu0 0.0
    %77 = vmatprep.subr.mxu0 0.0
    %78 = vmatpush1.msra.mxu0 0.0
    %79 = vmatprep.subr.mxu0 0.0
    %80 = vmatpush1.msra.mxu0 0.0
    %81 = vmatprep.subr.mxu0 0.0
    %82 = vmatpush1.msra.mxu0 0.0
    %83 = vmatprep.subr.mxu0 0.0
    %84 = vmatpush1.msra.mxu0 0.0
    %85 = vmatprep.subr.mxu0 0.0
    %86 = vmatpush1.msra.mxu0 0.0
    %87 = vmatprep.subr.mxu0 0.0
    %88 = vmatpush1.msra.mxu0 0.0
    %89 = vmatprep.subr.mxu0 0.0
    %90 = vmatpush1.msra.mxu0 0.0
    %91 = vmatprep.subr.mxu0 %v62
    %92 = vmatpush1.msra.mxu0 %v61
    %93 = vmatprep.subr.mxu0 %v60
    %94 = vmatpush1.msra.mxu0 %v59
    %95 = vmatprep.subr.mxu0 %v58
    %96 = vmatpush1.msra.mxu0 %v57
    %97 = vmatprep.subr.mxu0 %v56
    %98 = vmatpush1.msra.mxu0 %v55
    %99 = vmatprep.subr.mxu0 0.0
    %100 = vmatpush2.msra.mxu0 0.0
    %101 = vmatprep.subr.mxu0 0.0
    %102 = vmatpush2.msra.mxu0 0.0
    %103 = vmatprep.subr.mxu0 0.0
    %104 = vmatpush2.msra.mxu0 0.0
    %105 = vmatprep.subr.mxu0 0.0
    %106 = vmatpush2.msra.mxu0 0.0
    %107 = vmatprep.subr.mxu0 0.0
    %108 = vmatpush2.msra.mxu0 0.0
    %109 = vmatprep.subr.mxu0 0.0
    %110 = vmatpush2.msra.mxu0 0.0
    %111 = vmatprep.subr.mxu0 0.0
    %112 = vmatpush2.msra.mxu0 0.0
    %113 = vmatprep.subr.mxu0 0.0
    %114 = vmatpush2.msra.mxu0 0.0
    %115 = vmatprep.subr.mxu0 0.0
    %116 = vmatpush2.msra.mxu0 0.0
    %117 = vmatprep.subr.mxu0 0.0
    %118 = vmatpush2.msra.mxu0 0.0
    %119 = vmatprep.subr.mxu0 0.0
    %120 = vmatpush2.msra.mxu0 0.0
    %121 = vmatprep.subr.mxu0 0.0
    %122 = vmatpush2.msra.mxu0 0.0
    %123 = vmatprep.subr.mxu0 0.0
    %124 = vmatpush2.msra.mxu0 0.0
    %125 = vmatprep.subr.mxu0 0.0
    %126 = vmatpush2.msra.mxu0 0.0
    %127 = vmatprep.subr.mxu0 0.0
    %128 = vmatpush2.msra.mxu0 0.0
    %129 = vmatprep.subr.mxu0 0.0
    %130 = vmatpush2.msra.mxu0 0.0
    %131 = vmatprep.mubr.f32.mxu0 0.0
    %132 = vmatmul.mubr.f32.gmra.mxu0 %v65
    %v133 = vpop.f32.mrf.mxu0
    %v134 = vadd.f32 0.0, %v133
    %v135 = vpop.f32.mrf.mxu0
    %v136 = vadd.f32 0.0, %v135
    %137 = vdwg.mxu0
    %v138 = vmul.f32 %v134, 0.0625
    %v139 = vmul.f32 %v136, 0.0625
    %v140 = vld [vmem:[#allocation7] sm:$0xff]
    %v141 = vld [vmem:[#allocation7 + $0x8] sm:$0xff]
    %v142 = vld [vmem:[#allocation7 + $0x10] sm:$0xff]
    %v143 = vld [vmem:[#allocation7 + $0x18] sm:$0xff]
    %144 = vrot.lane.b32.xlu0 %v54, 96
    %v145 = vpop.permute.xlu0 %144
    %vm146 = vcmask 130048
    %v147 = vsel %vm146, %v145, 0
    %149 = vmatprep.subr.mxu0 0.0
    %150 = vmatpush1.msra.mxu0 0.0
    %151 = vmatprep.subr.mxu0 0.0
    %152 = vmatpush1.msra.mxu0 0.0
    %153 = vmatprep.subr.mxu0 0.0
    %154 = vmatpush1.msra.mxu0 0.0
    %155 = vmatprep.subr.mxu0 0.0
    %156 = vmatpush1.msra.mxu0 0.0
    %157 = vmatprep.subr.mxu0 0.0
    %158 = vmatpush1.msra.mxu0 0.0
    %159 = vmatprep.subr.mxu0 0.0
    %160 = vmatpush1.msra.mxu0 0.0
    %161 = vmatprep.subr.mxu0 0.0
    %162 = vmatpush1.msra.mxu0 0.0
    %163 = vmatprep.subr.mxu0 0.0
    %164 = vmatpush1.msra.mxu0 0.0
    %165 = vmatprep.subr.mxu0 0.0
    %166 = vmatpush1.msra.mxu0 0.0
    %167 = vmatprep.subr.mxu0 0.0
    %168 = vmatpush1.msra.mxu0 0.0
    %169 = vmatprep.subr.mxu0 0.0
    %170 = vmatpush1.msra.mxu0 0.0
    %171 = vmatprep.subr.mxu0 0.0
    %172 = vmatpush1.msra.mxu0 0.0
    %173 = vmatprep.subr.mxu0 0.0
    %174 = vmatpush1.msra.mxu0 0.0
    %175 = vmatprep.subr.mxu0 0.0
    %176 = vmatpush1.msra.mxu0 0.0
    %177 = vmatprep.subr.mxu0 %v143
    %178 = vmatpush1.msra.mxu0 %v142
    %179 = vmatprep.subr.mxu0 %v141
    %180 = vmatpush1.msra.mxu0 %v140
    %181 = vmatprep.subr.mxu0 0.0
    %182 = vmatpush2.msra.mxu0 0.0
    %183 = vmatprep.subr.mxu0 0.0
    %184 = vmatpush2.msra.mxu0 0.0
    %185 = vmatprep.subr.mxu0 0.0
    %186 = vmatpush2.msra.mxu0 0.0
    %187 = vmatprep.subr.mxu0 0.0
    %188 = vmatpush2.msra.mxu0 0.0
    %189 = vmatprep.subr.mxu0 0.0
    %190 = vmatpush2.msra.mxu0 0.0
    %191 = vmatprep.subr.mxu0 0.0
    %192 = vmatpush2.msra.mxu0 0.0
    %193 = vmatprep.subr.mxu0 0.0
    %194 = vmatpush2.msra.mxu0 0.0
    %195 = vmatprep.subr.mxu0 0.0
    %196 = vmatpush2.msra.mxu0 0.0
    %197 = vmatprep.subr.mxu0 0.0
    %198 = vmatpush2.msra.mxu0 0.0
    %199 = vmatprep.subr.mxu0 0.0
    %200 = vmatpush2.msra.mxu0 0.0
    %201 = vmatprep.subr.mxu0 0.0
    %202 = vmatpush2.msra.mxu0 0.0
    %203 = vmatprep.subr.mxu0 0.0
    %204 = vmatpush2.msra.mxu0 0.0
    %205 = vmatprep.subr.mxu0 0.0
    %206 = vmatpush2.msra.mxu0 0.0
    %207 = vmatprep.subr.mxu0 0.0
    %208 = vmatpush2.msra.mxu0 0.0
    %209 = vmatprep.subr.mxu0 0.0
    %210 = vmatpush2.msra.mxu0 0.0
    %211 = vmatprep.subr.mxu0 0.0
    %212 = vmatpush2.msra.mxu0 0.0
    %213 = vmatprep.mubr.f32.mxu0 0.0
    %214 = vmatmul.mubr.f32.gmra.mxu0 %v147
    %v215 = vpop.f32.mrf.mxu0
    %v216 = vadd.f32 0.0, %v215
    %v217 = vpop.f32.mrf.mxu0
    %v218 = vadd.f32 0.0, %v217
    %219 = vdwg.mxu0
    %v220 = vmul.f32 %v138, %v216
    %v221 = vmul.f32 %v139, %v218
    %222 = vst [vmem:[#allocation8] sm:$0xff] %v220
    %223 = vst [vmem:[#allocation8 + $0x8] sm:$0xff] %v221
    // Predicated region
    $region26: #{tpu_custom_call.1} parent=1 // pred_check
      _
    $region27: #{tpu_custom_call.1} parent=1 // pred_check_branch
      %225 = sbr.rel (0) target = $region29
    $region28: #{tpu_custom_call.1} parent=1 // pred_region
      %s227 = ssub.s32 256, 256
      %228 = vsyncadd [#allocation4], %s227
      %s230 = sshll.u32 [#allocation8], 4
      %s231 = int_to_ptr.vmem [resolvable:$true] %s230
      %233 = dma.vmem_to_hbm [thread:$0]  %s231, 256, %s3, [#allocation4]
    $region29: #{tpu_custom_call.1} parent=1 // pred_fallthru
      _
    // Predicated region
    $region30: #{tpu_custom_call.1} parent=1 // pred_check
      _
    $region31: #{tpu_custom_call.1} parent=1 // pred_check_branch
      %235 = sbr.rel (0) target = $region33
    $region32: #{tpu_custom_call.1} parent=1 // pred_region
      %236 = dma.done [#allocation4], 256
    $region33: #{tpu_custom_call.1} parent=1 // pred_fallthru
      _
    %237 = vsyncpa [#allocation3], 1
    %238 = vsyncpa [#allocation6], 1
    %239 = vsyncpa [#allocation4], 1

</llo_original>
